<compile_context>
chip_gen: v5e
topology: v5e:2x2
jax: 0.10.0
libtpu: 0.0.40
codegen_flags: <defaults>
</compile_context>

<pallas_src>
import functools

import jax
import jax.numpy as jnp
from jax.experimental import pallas as pl
from jax.experimental.pallas import tpu as pltpu


def _round_up(x: int, m: int) -> int:
    return ((x + m - 1) // m) * m


def _dice_ce_kernel(logits_ref, targets_ref, out_ref, ce_acc_ref, pt_acc_ref, *,
                    n_total: int, tile_n: int,
                    ce_weight: float, dice_weight: float, smooth: float):
    i = pl.program_id(0)

    @pl.when(i == 0)
    def _init():
        ce_acc_ref[...] = jnp.zeros_like(ce_acc_ref)
        pt_acc_ref[...] = jnp.zeros_like(pt_acc_ref)

    x = logits_ref[...].astype(jnp.float32)                  # [tile_n, C]
    t = targets_ref[...]                                     # [tile_n, 1] int32
    tn, c = x.shape

    # clamp targets (matches torch.clamp(targets.long(), 0, C-1))
    t = jnp.clip(t, 0, c - 1)

    # mask for padded rows of the (possibly ragged) last tile
    row = jax.lax.broadcasted_iota(jnp.int32, (tn, 1), 0) + i * tile_n
    valid = row < n_total                                    # [tile_n, 1] bool

    # class iota compared against broadcast targets (no f32 one-hot temporary)
    col = jax.lax.broadcasted_iota(jnp.int32, (tn, c), 1)
    sel = col == t                                           # [tile_n, C] bool

    # ----- numerically stable logsumexp + target logit -----
    m = jnp.max(x, axis=-1, keepdims=True)                   # [tile_n, 1]
    ex = jnp.exp(x - m)                                      # [tile_n, C] (EUP)
    se = jnp.sum(ex, axis=-1, keepdims=True)                 # [tile_n, 1]
    lse = m + jnp.log(se)                                    # [tile_n, 1]
    logit_t = jnp.sum(jnp.where(sel, x, 0.0),
                      axis=-1, keepdims=True)                # [tile_n, 1]

    # per-row CE term and per-row softmax prob of the target class
    ce_row = jnp.where(valid, lse - logit_t, 0.0)            # [tile_n, 1]
    p_t = jnp.where(valid, jnp.exp(logit_t - lse), 0.0)      # [tile_n, 1]

    ce_acc_ref[...] += jnp.sum(ce_row, keepdims=True)        # (1, 1)
    pt_acc_ref[...] += jnp.sum(p_t, keepdims=True)           # (1, 1)

    @pl.when(i == pl.num_programs(0) - 1)
    def _finalize():
        ce_mean = ce_acc_ref[...] * (1.0 / n_total)
        intersection = pt_acc_ref[...]
        union = 2.0 * n_total                                # sum(softmax)+sum(onehot)
        dice_coeff = (2.0 * intersection + smooth) / (union + smooth)
        out_ref[...] = (ce_weight * ce_mean
                        + dice_weight * (1.0 - dice_coeff)).astype(out_ref.dtype)


def dice_cross_entropy_loss(logits, targets, *,
                            ce_weight=1.0, dice_weight=1.0, smooth=1e-5,
                            tile_n=None):
    """logits: [N, C] float (any dtype), targets: [N] int. Returns scalar f32."""
    n, c = logits.shape
    t2 = targets.astype(jnp.int32).reshape(n, 1)

    if tile_n is None:
        # Keep each logits block ~<= 2 MiB in f32 working precision so the
        # double-buffered inputs stay far under the 32 MiB scoped VMEM default
        # (and under v7x's 64 MiB physical VMEM).
        budget_rows = max(8, (2 * 1024 * 1024) // (c * 4))
        tile_n = min(512, budget_rows, _round_up(n, 8))
        tile_n = max(8, (tile_n // 8) * 8)
    tile_n = int(tile_n)
    num_tiles = pl.cdiv(n, tile_n)

    kernel = functools.partial(
        _dice_ce_kernel,
        n_total=int(n),
        tile_n=tile_n,
        ce_weight=float(ce_weight),
        dice_weight=float(dice_weight),
        smooth=float(smooth),
    )

    itemsize = jnp.dtype(logits.dtype).itemsize
    cost = pl.CostEstimate(
        flops=6 * n * c,
        transcendentals=n * c + 2 * n,
        bytes_accessed=n * c * itemsize + n * 4 + 4,
    )

    out = pl.pallas_call(
        kernel,
        out_shape=jax.ShapeDtypeStruct((1, 1), jnp.float32),
        grid=(num_tiles,),
        in_specs=[
            pl.BlockSpec((tile_n, c), lambda i: (i, 0)),     # logits tile (native dtype)
            pl.BlockSpec((tile_n, 1), lambda i: (i, 0)),     # targets tile
        ],
        out_specs=pl.BlockSpec((1, 1), lambda i: (0, 0)),    # scalar, resident across grid
        scratch_shapes=[
            pltpu.VMEM((1, 1), jnp.float32),                 # CE sum accumulator
            pltpu.VMEM((1, 1), jnp.float32),                 # sum(p_target) accumulator
        ],
        compiler_params=pltpu.CompilerParams(
            dimension_semantics=("arbitrary",),              # reduction/accumulator axis
            vmem_limit_bytes=32 * 1024 * 1024,
        ),
        cost_estimate=cost,
    )(logits, t2)
    # TODO(synk): on v7x (2 TCs) a further split of the N-reduction into two
    # parallel partials could use both cores; kept sequential for portability.
    return out[0, 0]


def _reference(logits, targets, ce_weight=1.0, dice_weight=1.0, smooth=1e-5):
    """Pure-JAX reference mirroring the PyTorch module."""
    n, c = logits.shape
    t = jnp.clip(targets.astype(jnp.int32), 0, c - 1)
    lse = jax.nn.logsumexp(logits.astype(jnp.float32), axis=-1)
    ce = jnp.mean(lse - logits.astype(jnp.float32)[jnp.arange(n), t])
    p = jax.nn.softmax(logits.astype(jnp.float32), axis=-1)
    onehot = jax.nn.one_hot(t, c, dtype=jnp.float32)
    inter = jnp.sum(p * onehot)
    union = jnp.sum(p) + jnp.sum(onehot)
    dice = (2.0 * inter + smooth) / (union + smooth)
    return ce_weight * ce + dice_weight * (1.0 - dice)


if __name__ == "__main__":
    key = jax.random.PRNGKey(0)
    k1, k2 = jax.random.split(key)

    N, C = 20, 16
    logits = jax.random.normal(k1, (N, C), dtype=jnp.float32)
    targets = jax.random.randint(k2, (N,), 0, C, dtype=jnp.int32)

    ref = _reference(logits, targets)

    # Default tiling (single padded tile covering N).
    loss_a = jax.block_until_ready(dice_cross_entropy_loss(logits, targets))
    assert jnp.allclose(loss_a, ref, rtol=1e-4, atol=1e-5), (loss_a, ref)

    # Forced small tile -> multi-step grid with a ragged, masked last tile.
    loss_b = jax.block_until_ready(
        dice_cross_entropy_loss(logits, targets, tile_n=8))
    assert jnp.allclose(loss_b, ref, rtol=1e-4, atol=1e-5), (loss_b, ref)

    print("KERNEL_OK")
</pallas_src>

<mosaic_0001>
module attributes {stable_mosaic.version = 11 : i64} {
  func.func @_dice_ce_kernel(%arg0: i32, %arg1: memref<24x16xf32, #tpu.memory_space<vmem>>, %arg2: memref<24x1xi32, #tpu.memory_space<vmem>>, %arg3: memref<1x1xf32, #tpu.memory_space<vmem>>, %arg4: memref<1x1xf32, #tpu.memory_space<vmem>>, %arg5: memref<1x1xf32, #tpu.memory_space<vmem>>) attributes {dimension_semantics = [#tpu.dimension_semantics<arbitrary>], iteration_bounds = array<i64: 1>, scalar_prefetch = 0 : i64, scratch_operands = 2 : i64, tpu.core_type = #tpu.core_type<tc>, window_params = [{transform_indices = @transform_0, window_bounds = array<i64: 24, 16>}, {transform_indices = @transform_1, window_bounds = array<i64: 24, 1>}, {pipeline_mode = #tpu.pipeline_mode<synchronous>, transform_indices = @transform_2, window_bounds = array<i64: 1, 1>}]} {
    %c0_i32 = arith.constant 0 : i32
    %0 = arith.cmpi eq, %arg0, %c0_i32 : i32
    %1 = arith.extui %0 : i1 to i32
    %c0_i32_0 = arith.constant 0 : i32
    %2 = arith.cmpi ne, %1, %c0_i32_0 : i32
    scf.if %2 {
      %cst_22 = arith.constant 0.000000e+00 : f32
      %57 = vector.broadcast %cst_22 : f32 to vector<1x1xf32>
      %c0_23 = arith.constant 0 : index
      %c0_24 = arith.constant 0 : index
      %58 = vector.load %arg4[%c0_23, %c0_24] : memref<1x1xf32, #tpu.memory_space<vmem>>, vector<1x1xf32>
      tpu.vector_store %arg4[%c0_23, %c0_24], %57 {strides = array<i32>} : memref<1x1xf32, #tpu.memory_space<vmem>>, vector<1x1xf32>,
      %cst_25 = arith.constant 0.000000e+00 : f32
      %59 = vector.broadcast %cst_25 : f32 to vector<1x1xf32>
      %c0_26 = arith.constant 0 : index
      %c0_27 = arith.constant 0 : index
      %60 = vector.load %arg5[%c0_26, %c0_27] : memref<1x1xf32, #tpu.memory_space<vmem>>, vector<1x1xf32>
      tpu.vector_store %arg5[%c0_26, %c0_27], %59 {strides = array<i32>} : memref<1x1xf32, #tpu.memory_space<vmem>>, vector<1x1xf32>,
    } else {
    }
    %c0 = arith.constant 0 : index
    %c0_1 = arith.constant 0 : index
    %3 = vector.load %arg1[%c0, %c0_1] : memref<24x16xf32, #tpu.memory_space<vmem>>, vector<24x16xf32>
    %c0_2 = arith.constant 0 : index
    %c0_3 = arith.constant 0 : index
    %4 = vector.load %arg2[%c0_2, %c0_3] : memref<24x1xi32, #tpu.memory_space<vmem>>, vector<24x1xi32>
    %c0_i32_4 = arith.constant 0 : i32
    %c15_i32 = arith.constant 15 : i32
    %5 = vector.broadcast %c0_i32_4 : i32 to vector<24x1xi32>
    %6 = arith.maxsi %5, %4 : vector<24x1xi32>
    %7 = vector.broadcast %c15_i32 : i32 to vector<24x1xi32>
    %8 = arith.minsi %7, %6 : vector<24x1xi32>
    %9 = tpu.iota {dimensions = array<i32: 0>} : vector<24x1xi32>
    %c24_i32 = arith.constant 24 : i32
    %10 = arith.muli %arg0, %c24_i32 : i32
    %11 = vector.broadcast %10 : i32 to vector<24x1xi32>
    %12 = arith.addi %9, %11 : vector<24x1xi32>
    %c20_i32 = arith.constant 20 : i32
    %13 = vector.broadcast %c20_i32 : i32 to vector<24x1xi32>
    %14 = arith.cmpi slt, %12, %13 : vector<24x1xi32>
    %15 = tpu.iota {dimensions = array<i32: 1>} : vector<24x16xi32>
    %16 = vector.broadcast %8 : vector<24x1xi32> to vector<24x16xi32>
    %17 = arith.cmpi eq, %15, %16 : vector<24x16xi32>
    %cst = arith.constant dense<0xFF800000> : vector<24xf32>
    %18 = vector.multi_reduction <maximumf>, %3, %cst [1] : vector<24x16xf32> to vector<24xf32>
    %19 = vector.shape_cast %18 : vector<24xf32> to vector<24x1xf32>
    %20 = vector.broadcast %19 : vector<24x1xf32> to vector<24x16xf32>
    %21 = arith.subf %3, %20 : vector<24x16xf32>
    %22 = math.exp %21 : vector<24x16xf32>
    %cst_5 = arith.constant dense<0.000000e+00> : vector<24xf32>
    %23 = vector.multi_reduction <add>, %22, %cst_5 [1] : vector<24x16xf32> to vector<24xf32>
    %24 = vector.shape_cast %23 : vector<24xf32> to vector<24x1xf32>
    %25 = math.log %24 : vector<24x1xf32>
    %26 = arith.addf %19, %25 : vector<24x1xf32>
    %cst_6 = arith.constant 0.000000e+00 : f32
    %27 = vector.broadcast %cst_6 : f32 to vector<24x16xf32>
    %28 = arith.select %17, %3, %27 : vector<24x16xi1>, vector<24x16xf32>
    %cst_7 = arith.constant dense<0.000000e+00> : vector<24xf32>
    %29 = vector.multi_reduction <add>, %28, %cst_7 [1] : vector<24x16xf32> to vector<24xf32>
    %30 = vector.shape_cast %29 : vector<24xf32> to vector<24x1xf32>
    %31 = arith.subf %26, %30 : vector<24x1xf32>
    %cst_8 = arith.constant 0.000000e+00 : f32
    %32 = vector.broadcast %cst_8 : f32 to vector<24x1xf32>
    %33 = arith.select %14, %31, %32 : vector<24x1xi1>, vector<24x1xf32>
    %34 = arith.subf %30, %26 : vector<24x1xf32>
    %35 = math.exp %34 : vector<24x1xf32>
    %cst_9 = arith.constant 0.000000e+00 : f32
    %36 = vector.broadcast %cst_9 : f32 to vector<24x1xf32>
    %37 = arith.select %14, %35, %36 : vector<24x1xi1>, vector<24x1xf32>
    %c0_10 = arith.constant 0 : index
    %c0_11 = arith.constant 0 : index
    %38 = vector.load %arg4[%c0_10, %c0_11] : memref<1x1xf32, #tpu.memory_space<vmem>>, vector<1x1xf32>
    %39 = vector.shape_cast %33 : vector<24x1xf32> to vector<1x24x1xf32>
    %cst_12 = arith.constant dense<0.000000e+00> : vector<1xf32>
    %40 = vector.multi_reduction <add>, %39, %cst_12 [1, 2] : vector<1x24x1xf32> to vector<1xf32>
    %41 = vector.shape_cast %40 : vector<1xf32> to vector<1x1x1xf32>
    %42 = vector.extract %41[0, 0, 0] : f32 from vector<1x1x1xf32>
    %43 = vector.broadcast %42 : f32 to vector<1x1xf32>
    %44 = arith.addf %38, %43 : vector<1x1xf32>
    %c0_13 = arith.constant 0 : index
    %c0_14 = arith.constant 0 : index
    %45 = vector.load %arg4[%c0_13, %c0_14] : memref<1x1xf32, #tpu.memory_space<vmem>>, vector<1x1xf32>
    tpu.vector_store %arg4[%c0_13, %c0_14], %44 {strides = array<i32>} : memref<1x1xf32, #tpu.memory_space<vmem>>, vector<1x1xf32>,
    %c0_15 = arith.constant 0 : index
    %c0_16 = arith.constant 0 : index
    %46 = vector.load %arg5[%c0_15, %c0_16] : memref<1x1xf32, #tpu.memory_space<vmem>>, vector<1x1xf32>
    %47 = vector.shape_cast %37 : vector<24x1xf32> to vector<1x24x1xf32>
    %cst_17 = arith.constant dense<0.000000e+00> : vector<1xf32>
    %48 = vector.multi_reduction <add>, %47, %cst_17 [1, 2] : vector<1x24x1xf32> to vector<1xf32>
    %49 = vector.shape_cast %48 : vector<1xf32> to vector<1x1x1xf32>
    %50 = vector.extract %49[0, 0, 0] : f32 from vector<1x1x1xf32>
    %51 = vector.broadcast %50 : f32 to vector<1x1xf32>
    %52 = arith.addf %46, %51 : vector<1x1xf32>
    %c0_18 = arith.constant 0 : index
    %c0_19 = arith.constant 0 : index
    %53 = vector.load %arg5[%c0_18, %c0_19] : memref<1x1xf32, #tpu.memory_space<vmem>>, vector<1x1xf32>
    tpu.vector_store %arg5[%c0_18, %c0_19], %52 {strides = array<i32>} : memref<1x1xf32, #tpu.memory_space<vmem>>, vector<1x1xf32>,
    %c0_i32_20 = arith.constant 0 : i32
    %54 = arith.cmpi eq, %arg0, %c0_i32_20 : i32
    %55 = arith.extui %54 : i1 to i32
    %c0_i32_21 = arith.constant 0 : i32
    %56 = arith.cmpi ne, %55, %c0_i32_21 : i32
    scf.if %56 {
      %c0_22 = arith.constant 0 : index
      %c0_23 = arith.constant 0 : index
      %57 = vector.load %arg4[%c0_22, %c0_23] : memref<1x1xf32, #tpu.memory_space<vmem>>, vector<1x1xf32>
      %cst_24 = arith.constant 5.000000e-02 : f32
      %58 = vector.broadcast %cst_24 : f32 to vector<1x1xf32>
      %59 = arith.mulf %57, %58 : vector<1x1xf32>
      %c0_25 = arith.constant 0 : index
      %c0_26 = arith.constant 0 : index
      %60 = vector.load %arg5[%c0_25, %c0_26] : memref<1x1xf32, #tpu.memory_space<vmem>>, vector<1x1xf32>
      %cst_27 = arith.constant 2.000000e+00 : f32
      %61 = vector.broadcast %cst_27 : f32 to vector<1x1xf32>
      %62 = arith.mulf %61, %60 : vector<1x1xf32>
      %cst_28 = arith.constant 9.99999974E-6 : f32
      %63 = vector.broadcast %cst_28 : f32 to vector<1x1xf32>
      %64 = arith.addf %62, %63 : vector<1x1xf32>
      %cst_29 = arith.constant 40.0000114 : f32
      %65 = vector.broadcast %cst_29 : f32 to vector<1x1xf32>
      %66 = arith.divf %64, %65 : vector<1x1xf32>
      %cst_30 = arith.constant 1.000000e+00 : f32
      %67 = vector.broadcast %cst_30 : f32 to vector<1x1xf32>
      %68 = arith.mulf %67, %59 : vector<1x1xf32>
      %cst_31 = arith.constant 1.000000e+00 : f32
      %69 = vector.broadcast %cst_31 : f32 to vector<1x1xf32>
      %70 = arith.subf %69, %66 : vector<1x1xf32>
      %cst_32 = arith.constant 1.000000e+00 : f32
      %71 = vector.broadcast %cst_32 : f32 to vector<1x1xf32>
      %72 = arith.mulf %71, %70 : vector<1x1xf32>
      %73 = arith.addf %68, %72 : vector<1x1xf32>
      %c0_33 = arith.constant 0 : index
      %c0_34 = arith.constant 0 : index
      %74 = vector.load %arg3[%c0_33, %c0_34] : memref<1x1xf32, #tpu.memory_space<vmem>>, vector<1x1xf32>
      tpu.vector_store %arg3[%c0_33, %c0_34], %73 {strides = array<i32>} : memref<1x1xf32, #tpu.memory_space<vmem>>, vector<1x1xf32>,
    } else {
    }
    return
  }
  func.func @transform_0(%arg0: i32) -> (i32, i32) {
    %c0_i32 = arith.constant 0 : i32
    %c0_i32_0 = arith.constant 0 : i32
    return %arg0, %c0_i32 : i32, i32
  }
  func.func @transform_1(%arg0: i32) -> (i32, i32) {
    %c0_i32 = arith.constant 0 : i32
    %c0_i32_0 = arith.constant 0 : i32
    return %arg0, %c0_i32 : i32, i32
  }
  func.func @transform_2(%arg0: i32) -> (i32, i32) {
    %c0_i32 = arith.constant 0 : i32
    %c0_i32_0 = arith.constant 0 : i32
    %c0_i32_1 = arith.constant 0 : i32
    return %c0_i32, %c0_i32_0 : i32, i32
  }
}

</mosaic_0001>

<llo_original>
// kernel: tpu_custom_call.1
$region0: #{tpu_custom_call.1}
  #allocation0 [shape = 'u32[]', space=smem, size = 0x4, offset = 0x4, fixed_abs, tag = 'smem constant byte address 0x4 - core index']
  #allocation1 [shape = 'u32[72,128]{1,0:T(1,128)}', space=vmem, size = 0x9000, scoped, tag = 'internal scratch']
  #allocation2 [shape = 'f32[1,1]{1,0:T(1,128)}', space=vmem, size = 0x200, scoped, tag = 'scratch operand']
  #allocation3 [shape = 'f32[1,1]{1,0:T(1,128)}', space=vmem, size = 0x200, scoped, tag = 'scratch operand']
  %s0 = inlined_call_operand.vmem [shape: f32[20,16], index: 0, kind: input, shape index: {}]
  %s1 = inlined_call_operand.vmem [shape: s32[20,1], index: 1, kind: input, shape index: {}]
  %s2 = inlined_call_operand.hbm [shape: f32[1,1], index: 2, kind: output, shape index: {}]
  %s3 = sld [smem:[#allocation0]]
  $region26: #{tpu_custom_call.1} parent=0
    _
  %s5 = ssub.s32 1, %s3
  %s6 = scalar_select 0, %s5, %s3
  $region1: #{tpu_custom_call.1} parent=0
    #allocation4 [shape = 'u8[512]{0}', space=vmem, size = 0x400, scoped, tag = 'output window, operand 0, single buffered']
    #allocation5 [shape = 's32[1]{0}', space=sflag, size = 0x4, scoped, tag = 'scoped memory for tpu_custom_call.1']
    %7 = vsyncpa [#allocation5], 0
    // Predicated region
    $region2: #{tpu_custom_call.1} parent=1 // pred_check
      _
    $region3: #{tpu_custom_call.1} parent=1 // pred_check_branch
      %9 = sbr.rel (0) target = $region5
    $region4: #{tpu_custom_call.1} parent=1 // pred_region
      _
    $region5: #{tpu_custom_call.1} parent=1 // pred_fallthru
      _
    // Predicated region
    $region6: #{tpu_custom_call.1} parent=1 // pred_check
      _
    $region7: #{tpu_custom_call.1} parent=1 // pred_check_branch
      %11 = sbr.rel (0) target = $region9
    $region8: #{tpu_custom_call.1} parent=1 // pred_region
      _
    $region9: #{tpu_custom_call.1} parent=1 // pred_fallthru
      _
    %p12 = scmp.eq.s32.totalorder 0, 0
    // Predicated region
    $region10: #{tpu_custom_call.1} parent=1 // pred_check
      %p13 = pneg %p12
    $region11: #{tpu_custom_call.1} parent=1 // pred_check_branch
      %15 = sbr.rel (%p13) target = $region13
    $region12: #{tpu_custom_call.1} parent=1 // pred_region
      %vm16 = vcmask 0
      %17 = vst.msk [vmem:[#allocation2] sm:$0x1] %vm16, 0.0
      %18 = vst.msk [vmem:[#allocation3] sm:$0x1] %vm16, 0.0
    $region13: #{tpu_custom_call.1} parent=1 // pred_fallthru
      _
    %v19 = vld [vmem:[%s0] sm:$0xff]
    %v20 = vld [vmem:[%s0 + $0x8] sm:$0xff]
    %v21 = vld [vmem:[%s0 + $0x10] sm:$0xff]
    %v22 = vld [vmem:[%s1] sm:$0xff]
    %v23 = vld [vmem:[%s1 + $0x8] sm:$0xff]
    %v24 = vld [vmem:[%s1 + $0x10] sm:$0xff]
    %vm25 = vcmp.gt.s32.totalorder %v22, 0
    %v26 = vsel %vm25, %v22, 0
    %vm27 = vcmp.gt.s32.totalorder %v23, 0
    %v28 = vsel %vm27, %v23, 0
    %vm29 = vcmp.gt.s32.totalorder %v24, 0
    %v30 = vsel %vm29, %v24, 0
    %vm31 = vcmp.lt.s32.totalorder %v26, 15
    %v32 = vsel %vm31, %v26, 15
    %vm33 = vcmp.lt.s32.totalorder %v28, 15
    %v34 = vsel %vm33, %v28, 15
    %vm35 = vcmp.lt.s32.totalorder %v30, 15
    %v36 = vsel %vm35, %v30, 15
    %v37 = vlaneseq
    %v38 = vshrl.u32 %v37, 7
    %v39 = vadd.s32 %v38, 8
    %v40 = vadd.s32 %v38, 16
    %s41 = smul.u32 0, 24
    %v42 = vstv %s41
    %v43 = vadd.s32 %v38, %v42
    %v44 = vadd.s32 %v39, %v42
    %v45 = vadd.s32 %v40, %v42
    %vm46 = vcmp.lt.s32.totalorder %v43, 20
    %vm47 = vcmp.lt.s32.totalorder %v44, 20
    %vm48 = vcmp.lt.s32.totalorder %v45, 20
    %v49 = vlaneseq
    %v50 = vand.u32 %v49, 127
    %51 = vset.pattern.permute.xlu0 0
    %52 = vperm.xlu0 %51, %v32
    %v53 = vpop.permute.xlu0 %52
    %54 = vset.pattern.permute.xlu0 0
    %55 = vperm.xlu0 %54, %v34
    %v56 = vpop.permute.xlu0 %55
    %57 = vset.pattern.permute.xlu0 0
    %58 = vperm.xlu0 %57, %v36
    %v59 = vpop.permute.xlu0 %58
    %vm60 = vcmp.eq.s32.totalorder %v50, %v53
    %vm61 = vcmp.eq.s32.totalorder %v50, %v56
    %vm62 = vcmp.eq.s32.totalorder %v50, %v59
    %vm63 = vcmask 130048
    %v64 = vsel %vm63, %v19, -inf
    %65 = vmax.xlane.f32.xlu0 %v64
    %v66 = vpop.xlane.xlu0 %65
    %v67 = vsel %vm63, %v20, -inf
    %68 = vmax.xlane.f32.xlu0 %v67
    %v69 = vpop.xlane.xlu0 %68
    %v70 = vsel %vm63, %v21, -inf
    %71 = vmax.xlane.f32.xlu0 %v70
    %v72 = vpop.xlane.xlu0 %71
    %v73 = vsub.f32 %v19, %v66
    %v74 = vsub.f32 %v20, %v69
    %v75 = vsub.f32 %v21, %v72
    %v76 = vmul.f32 %v73, 1.442695
    %v77 = vpow.pop %v76
    %v78 = vmul.f32 %v74, 1.442695
    %v79 = vpow.pop %v78
    %v80 = vmul.f32 %v75, 1.442695
    %v81 = vpow.pop %v80
    %v82 = vsel %vm63, %v77, 0.0
    %83 = vadd.xlane.f32.xlu0 %v82
    %v84 = vpop.xlane.xlu0 %83
    %v85 = vsel %vm63, %v79, 0.0
    %86 = vadd.xlane.f32.xlu0 %v85
    %v87 = vpop.xlane.xlu0 %86
    %v88 = vsel %vm63, %v81, 0.0
    %89 = vadd.xlane.f32.xlu0 %v88
    %v90 = vpop.xlane.xlu0 %89
    %v91 = vlog2.pop %v84
    %v92 = vmul.f32 %v91, 0.6931472
    %v93 = vlog2.pop %v87
    %v94 = vmul.f32 %v93, 0.6931472
    %v95 = vlog2.pop %v90
    %v96 = vmul.f32 %v95, 0.6931472
    %v97 = vadd.f32 %v66, %v92
    %v98 = vadd.f32 %v69, %v94
    %v99 = vadd.f32 %v72, %v96
    %v100 = vsel %vm60, %v19, 0.0
    %v101 = vsel %vm61, %v20, 0.0
    %v102 = vsel %vm62, %v21, 0.0
    %v103 = vsel %vm63, %v100, 0.0
    %104 = vadd.xlane.f32.xlu0 %v103
    %v105 = vpop.xlane.xlu0 %104
    %v106 = vsel %vm63, %v101, 0.0
    %107 = vadd.xlane.f32.xlu0 %v106
    %v108 = vpop.xlane.xlu0 %107
    %v109 = vsel %vm63, %v102, 0.0
    %110 = vadd.xlane.f32.xlu0 %v109
    %v111 = vpop.xlane.xlu0 %110
    %v112 = vsub.f32 %v97, %v105
    %v113 = vsub.f32 %v98, %v108
    %v114 = vsub.f32 %v99, %v111
    %v115 = vsel %vm46, %v112, 0.0
    %v116 = vsel %vm47, %v113, 0.0
    %v117 = vsel %vm48, %v114, 0.0
    %v118 = vsub.f32 %v105, %v97
    %v119 = vsub.f32 %v108, %v98
    %v120 = vsub.f32 %v111, %v99
    %v121 = vmul.f32 %v118, 1.442695
    %v122 = vpow.pop %v121
    %v123 = vmul.f32 %v119, 1.442695
    %v124 = vpow.pop %v123
    %v125 = vmul.f32 %v120, 1.442695
    %v126 = vpow.pop %v125
    %v127 = vsel %vm46, %v122, 0.0
    %v128 = vsel %vm47, %v124, 0.0
    %v129 = vsel %vm48, %v126, 0.0
    %v130 = vld [vmem:[#allocation2] sm:$0x1]
    %vm131 = vcmask 7168
    %v132 = vsel %vm131, %v115, 0.0
    %v133 = vsel %vm131, %v116, 0.0
    %v134 = vadd.f32 %v132, %v133
    %v135 = vsel %vm131, %v117, 0.0
    %v136 = vadd.f32 %v134, %v135
    %137 = vadd.xlane.f32.xlu0 %v136
    %v138 = vpop.xlane.xlu0 %137
    %v139 = vrot.slane %v138, 4
    %v140 = vadd.f32 %v138, %v139
    %v141 = vrot.slane %v140, 2
    %v142 = vadd.f32 %v140, %v141
    %v143 = vrot.slane %v142, 1
    %v144 = vadd.f32 %v142, %v143
    %s145 = vtos %v144
    %v146 = vstv %s145
    %v147 = vadd.f32 %v130, %v146
    %vm148 = vcmask 0
    %149 = vst.msk [vmem:[#allocation2] sm:$0x1] %vm148, %v147
    %v150 = vld [vmem:[#allocation3] sm:$0x1]
    %v151 = vsel %vm131, %v127, 0.0
    %v152 = vsel %vm131, %v128, 0.0
    %v153 = vadd.f32 %v151, %v152
    %v154 = vsel %vm131, %v129, 0.0
    %v155 = vadd.f32 %v153, %v154
    %156 = vadd.xlane.f32.xlu0 %v155
    %v157 = vpop.xlane.xlu0 %156
    %v158 = vrot.slane %v157, 4
    %v159 = vadd.f32 %v157, %v158
    %v160 = vrot.slane %v159, 2
    %v161 = vadd.f32 %v159, %v160
    %v162 = vrot.slane %v161, 1
    %v163 = vadd.f32 %v161, %v162
    %s164 = vtos %v163
    %v165 = vstv %s164
    %v166 = vadd.f32 %v150, %v165
    %167 = vst.msk [vmem:[#allocation3] sm:$0x1] %vm148, %v166
    // Predicated region
    $region14: #{tpu_custom_call.1} parent=1 // pred_check
      %p168 = pneg %p12
    $region15: #{tpu_custom_call.1} parent=1 // pred_check_branch
      %170 = sbr.rel (%p168) target = $region17
    $region16: #{tpu_custom_call.1} parent=1 // pred_region
      %v171 = vld [vmem:[#allocation2] sm:$0x1]
      %v172 = vmul.f32 %v171, 0.05
      %v173 = vld [vmem:[#allocation3] sm:$0x1]
      %v174 = vmul.f32 %v173, 2.0
      %v175 = vadd.f32 %v174, 1e-05
      %v176 = vrcp.pop 40.00001
      %v177 = vmul.f32 40.00001, %v176
      %v178 = vsub.f32 1.0, %v177
      %v179 = vmul.f32 %v176, %v178
      %v180 = vadd.f32 %v176, %v179
      %vm181 = vweird.f32 %v176
      %v182 = vsel %vm181, %v176, %v180
      %v183 = vmul.f32 %v175, %v182
      %v184 = vsub.f32 1.0, %v183
      %v185 = vadd.f32 %v172, %v184
      %186 = vst.msk [vmem:[#allocation4] sm:$0x1] %vm148, %v185
    $region17: #{tpu_custom_call.1} parent=1 // pred_fallthru
      _
    // Predicated region
    $region18: #{tpu_custom_call.1} parent=1 // pred_check
      _
    $region19: #{tpu_custom_call.1} parent=1 // pred_check_branch
      %188 = sbr.rel (0) target = $region21
    $region20: #{tpu_custom_call.1} parent=1 // pred_region
      %190 = vsyncadd [#allocation5], 0
      %s192 = sshll.u32 [#allocation4], 4
      %s193 = int_to_ptr.vmem [resolvable:$true] %s192
      %s194 = sshll.u32 %s2, 4
      %s195 = int_to_ptr.hbm [resolvable:$true] %s194
      %197 = dma.vmem_to_hbm [thread:$0]  %s193, 16, %s195, [#allocation5]
    $region21: #{tpu_custom_call.1} parent=1 // pred_fallthru
      _
    // Predicated region
    $region22: #{tpu_custom_call.1} parent=1 // pred_check
      _
    $region23: #{tpu_custom_call.1} parent=1 // pred_check_branch
      %199 = sbr.rel (0) target = $region25
    $region24: #{tpu_custom_call.1} parent=1 // pred_region
      %201 = dma.done [#allocation5], 16
    $region25: #{tpu_custom_call.1} parent=1 // pred_fallthru
      _
    %202 = vsyncpa [#allocation5], 1

</llo_original>
